<compile_context>
chip_gen: v5e
topology: v5e:2x2
jax: 0.10.0
libtpu: 0.0.40
codegen_flags: <defaults>
</compile_context>

<pallas_src>
import math
from functools import partial

import jax
import jax.numpy as jnp
from jax.experimental import pallas as pl
from jax.experimental.pallas import tpu as pltpu

KSIZE = 5      # Conv1d kernel_size
PAD = 2        # Conv1d padding
LANE = 128     # TPU lane width


def _round_up(v, m):
    return ((v + m - 1) // m) * m


def _pad_to(arr, shape):
    pads = [(0, t - s) for s, t in zip(arr.shape, shape)]
    if all(p == (0, 0) for p in pads):
        return arr
    return jnp.pad(arr, pads)


def _device_params():
    """Generation-aware (tile cap, scoped VMEM limit).

    v5e/v6e: 128 MiB VMEM -> deeper tiles, 64 MiB scoped limit.
    v7x:      64 MiB VMEM -> tiles capped at 1024, <= 48 MiB scoped limit.
    Conservative fallback if the hardware query is unavailable.
    """
    try:
        vmem_cap = int(pltpu.get_tpu_info().vmem_capacity_bytes)
    except Exception:
        vmem_cap = 0
    if vmem_cap >= 100 * 1024 * 1024:          # v5e / v6e
        return 2048, 64 * 1024 * 1024
    if vmem_cap > 0:                           # v7x (64 MiB per TensorCore)
        return 1024, 48 * 1024 * 1024
    return 1024, 32 * 1024 * 1024              # unknown: safe on every generation


def _fit_tile_cap(cap, cout_p, budget):
    """Shrink the adj tile until the aggregation kernel's VMEM working set fits.

    Worst-case accounting: f32 adj tiles (2 buffers), bf16 support tiles (2),
    f32 out tiles (2), f32 residual tiles (2), f32 accumulator (1).
    """
    t = cap
    while t > LANE:
        ws = 2 * t * t * 4 + t * cout_p * (2 * 2 + 2 * 4 + 2 * 4 + 4)
        if ws <= budget:
            break
        t -= LANE
    return t


def _pick_tile(n, cap):
    """Largest lane-dense tile (<= cap) minimizing padding of the node axis.

    Prefers tiles that divide N exactly so adj can be streamed without any
    wrapper-side re-materialization.
    """
    best_t, best_np = LANE, _round_up(n, LANE)
    for t in range(LANE, cap + 1, LANE):
        n_p = _round_up(n, t)
        if n_p < best_np or (n_p == best_np and t > best_t):
            best_t, best_np = t, n_p
    return best_t, best_np


def _divisor_tile(n_p, cap):
    """Largest multiple of 128 <= cap that divides n_p (n_p is a multiple of 128)."""
    t = LANE
    for c in range(LANE, cap + 1, LANE):
        if n_p % c == 0:
            t = c
    return t


# ---------------------------------------------------------------------------
# Prep kernel: y[b] = x[b] @ W (+ bias)   (support and Conv1d-im2col residual)
# ---------------------------------------------------------------------------
def _linear_kernel(*refs, add_bias):
    it = iter(refs)
    x_ref = next(it)                          # (1, TP, K)   f32
    w_ref = next(it)                          # (K, Cp)      bf16
    b_ref = next(it) if add_bias else None    # (1, Cp)      f32
    out_ref = next(it)                        # (1, TP, Cp)  out dtype
    y = jnp.dot(x_ref[0].astype(jnp.bfloat16), w_ref[...],
                preferred_element_type=jnp.float32)
    if add_bias:
        y = y + b_ref[...]
    out_ref[0] = y.astype(out_ref.dtype)


def _linear(x, w, bias, out_dtype, vmem_limit):
    B, n_p, k_dim = x.shape
    cp = w.shape[1]
    tp = _divisor_tile(n_p, 512)
    in_specs = [
        pl.BlockSpec((1, tp, k_dim), lambda b, i: (b, i, 0)),
        pl.BlockSpec((k_dim, cp), lambda b, i: (0, 0)),
    ]
    args = [x, w]
    if bias is not None:
        in_specs.append(pl.BlockSpec((1, cp), lambda b, i: (0, 0)))
        args.append(bias)
    return pl.pallas_call(
        partial(_linear_kernel, add_bias=bias is not None),
        out_shape=jax.ShapeDtypeStruct((B, n_p, cp), out_dtype),
        grid=(B, n_p // tp),
        in_specs=in_specs,
        out_specs=pl.BlockSpec((1, tp, cp), lambda b, i: (b, i, 0)),
        compiler_params=pltpu.CompilerParams(
            dimension_semantics=("parallel", "parallel"),
            vmem_limit_bytes=vmem_limit),
    )(*args)


# ---------------------------------------------------------------------------
# Aggregation kernel: out = adj @ support (+ bias) (+ residual)
# ---------------------------------------------------------------------------
def _aggregate_kernel(*refs, add_bias, has_res):
    """Grid = (B, row tiles, contraction tiles); axis 2 is the reduction axis."""
    it = iter(refs)
    adj_ref = next(it)                        # (1, TM, TK)   caller dtype (f32/bf16)
    sup_ref = next(it)                        # (1, TK, Cp)   bf16
    b_ref = next(it) if add_bias else None    # (1, Cp)       f32
    r_ref = next(it) if has_res else None     # (1, TM, Cp)   f32
    out_ref = next(it)                        # (1, TM, Cp)   f32
    acc_ref = next(it)                        # (TM, Cp)      f32 scratch

    k = pl.program_id(2)

    @pl.when(k == 0)
    def _init():
        # bias / residual are independent of the contraction axis: seed the
        # accumulator with them once per (batch, row tile), in f32.
        if has_res:
            init = r_ref[0].astype(jnp.float32)
        else:
            init = jnp.zeros_like(acc_ref)
        if add_bias:
            init = init + b_ref[...]
        acc_ref[...] = init

    # adj is streamed in the caller's dtype; the bf16 cast is a VPU op hidden under
    # the DMA/MXU slack.  Accumulation stays f32.
    acc_ref[...] += jnp.dot(adj_ref[0].astype(jnp.bfloat16), sup_ref[0],
                            preferred_element_type=jnp.float32)

    @pl.when(k == pl.num_programs(2) - 1)
    def _finalize():
        out_ref[0] = acc_ref[...].astype(out_ref.dtype)


# ---------------------------------------------------------------------------
# Module wrapper (deterministic parameter init, matching PyTorch shapes)
# ---------------------------------------------------------------------------
class GraphConvolution:
    def __init__(self, in_features, out_features, bias=False, residual=True, *, key):
        self.in_features = in_features
        self.out_features = out_features
        self.use_bias = bool(bias)
        if not residual and in_features != out_features:
            # The reference PyTorch module crashes in forward() for this config
            # (it calls .permute on the int 0); refuse it explicitly.
            raise NotImplementedError(
                "residual=False with in_features != out_features is not supported "
                "(the reference PyTorch module crashes for this configuration)")

        kw, kcw, kcb = jax.random.split(key, 3)

        # xavier_uniform_ for the GCN weight (in_features, out_features)
        bound = math.sqrt(6.0 / (in_features + out_features))
        self.weight = jax.random.uniform(kw, (in_features, out_features),
                                         jnp.float32, -bound, bound)
        # GCN bias: filled with 0.1 when bias=True (as in reset_parameters)
        self.bias = jnp.full((1, out_features), 0.1, jnp.float32) if bias else None

        if not residual:
            self.mode = "none"
        elif in_features == out_features:
            self.mode = "identity"
        else:
            self.mode = "conv"
            # nn.Conv1d default init: uniform(+-1/sqrt(fan_in)), fan_in = Cin*K
            fan_in = in_features * KSIZE
            cbound = 1.0 / math.sqrt(fan_in)
            # stored as (K, Cin, Cout) == torch (Cout, Cin, K) transposed
            self.conv_weight = jax.random.uniform(
                kcw, (KSIZE, in_features, out_features), jnp.float32, -cbound, cbound)
            self.conv_bias = jax.random.uniform(
                kcb, (1, out_features), jnp.float32, -cbound, cbound)

    def __call__(self, x, adj, *, max_tile=None):
        B, N, Cin = x.shape
        assert Cin == self.in_features
        Cout = self.out_features
        Cout_p = _round_up(Cout, LANE)             # lane-dense output / support

        tile_cap, vmem_limit = _device_params()
        if max_tile is not None:
            tile_cap = max(LANE, min(tile_cap, max_tile))
        tile_cap = _fit_tile_cap(tile_cap, Cout_p, int(vmem_limit * 0.8))
        T, N_p = _pick_tile(N, tile_cap)
        NI = NK = N_p // T

        # ---- prep: support (bf16), residual (f32), biases ---------------------
        # Zero-padded rows of x -> exactly-zero support rows beyond N, so padded
        # adj columns (or garbage output rows that get sliced off) stay harmless.
        x_rows = _pad_to(x, (B, N_p, Cin))
        w_p = _pad_to(self.weight.astype(jnp.bfloat16), (Cin, Cout_p))
        support = _linear(x_rows, w_p, None, jnp.bfloat16, vmem_limit)

        residual = None
        if self.mode == "identity":
            # residual added from the original f32 x (no bf16 round-trip).
            residual = _pad_to(x_rows, (B, N_p, Cout_p))
        elif self.mode == "conv":
            # Conv1d(k=5, pad=2) over the node axis as a single im2col matmul;
            # zero row padding reproduces Conv1d's zero padding exactly.
            x_halo = jnp.pad(x_rows, ((0, 0), (PAD, PAD), (0, 0)))
            x_col = jnp.concatenate(
                [x_halo[:, kk:kk + N_p, :] for kk in range(KSIZE)], axis=-1)
            wc_flat = _pad_to(
                self.conv_weight.reshape(KSIZE * Cin, Cout).astype(jnp.bfloat16),
                (KSIZE * Cin, Cout_p))
            bc_p = _pad_to(self.conv_bias, (1, Cout_p))
            residual = _linear(x_col, wc_flat, bc_p, jnp.float32, vmem_limit)

        bias_p = _pad_to(self.bias, (1, Cout_p)) if self.use_bias else None

        # ---- adj stream --------------------------------------------------------
        # Tile-aligned N: stream the caller's array directly (f32 or bf16) and cast
        # each tile in-kernel.  Otherwise one unavoidable pad pass, with the bf16
        # cast folded into it so the kernel reads half the bytes.
        adj_in = adj if N_p == N else _pad_to(adj.astype(jnp.bfloat16), (B, N_p, N_p))

        in_specs = [
            pl.BlockSpec((1, T, T), lambda b, i, k: (b, i, k)),        # adj tile
            # TODO(synk): sweep pipeline_mode=pl.Buffered(3) on the adj spec (v7x).
            pl.BlockSpec((1, T, Cout_p), lambda b, i, k: (b, k, 0)),   # support tile
        ]
        args = [adj_in, support]
        if bias_p is not None:
            in_specs.append(pl.BlockSpec((1, Cout_p), lambda b, i, k: (0, 0)))
            args.append(bias_p)
        if residual is not None:
            in_specs.append(pl.BlockSpec((1, T, Cout_p), lambda b, i, k: (b, i, 0)))
            args.append(residual)

        out_p = pl.pallas_call(
            partial(_aggregate_kernel, add_bias=bias_p is not None,
                    has_res=residual is not None),
            out_shape=jax.ShapeDtypeStruct((B, N_p, Cout_p), jnp.float32),
            grid=(B, NI, NK),
            in_specs=in_specs,
            out_specs=pl.BlockSpec((1, T, Cout_p), lambda b, i, k: (b, i, 0)),
            scratch_shapes=[pltpu.VMEM((T, Cout_p), jnp.float32)],
            compiler_params=pltpu.CompilerParams(
                dimension_semantics=("parallel", "parallel", "arbitrary"),
                vmem_limit_bytes=vmem_limit),
        )(*args)

        if N_p == N and Cout_p == Cout:
            return out_p                        # no padding -> skip the extra pass
        return out_p[:, :N, :Cout]


# ---------------------------------------------------------------------------
# Pure-JAX reference (for correctness check only)
# ---------------------------------------------------------------------------
def gcn_reference(layer, x, adj):
    support = jnp.einsum("bnc,co->bno", x, layer.weight,
                         precision=jax.lax.Precision.HIGHEST)
    out = jnp.einsum("bnm,bmo->bno", adj, support,
                     precision=jax.lax.Precision.HIGHEST)
    if layer.use_bias:
        out = out + layer.bias[None]
    if layer.mode == "identity":
        out = out + x
    elif layer.mode == "conv":
        xin = jnp.transpose(x, (0, 2, 1))                    # (B, Cin, N) == torch NCW
        w_oih = jnp.transpose(layer.conv_weight, (2, 1, 0))  # (Cout, Cin, K)
        res = jax.lax.conv_general_dilated(
            xin, w_oih, (1,), [(PAD, PAD)],
            dimension_numbers=("NCH", "OIH", "NCH"),
            precision=jax.lax.Precision.HIGHEST)
        res = res + layer.conv_bias.reshape(1, -1, 1)
        out = out + jnp.transpose(res, (0, 2, 1))
    return out


if __name__ == "__main__":
    key = jax.random.PRNGKey(0)
    k_x, k_adj, k_p1, k_p2, k_p3, k_p4, k_x4, k_a4 = jax.random.split(key, 8)

    # bf16 MXU inputs (f32 accumulation) vs an all-f32 reference -> loosened tolerance
    ATOL = RTOL = 3e-2

    B, N, Cin, Cout = 2, 16, 8, 16
    x = jax.random.normal(k_x, (B, N, Cin), jnp.float32)
    adj = jax.random.uniform(k_adj, (B, N, N), jnp.float32)
    adj = adj / jnp.sum(adj, axis=-1, keepdims=True)         # row-normalized adjacency

    # Case 1: Cin != Cout -> Conv1d(k=5, pad=2) residual (padded-adj path)
    layer = GraphConvolution(Cin, Cout, bias=False, residual=True, key=k_p1)
    out = jax.block_until_ready(layer(x, adj))
    ref = gcn_reference(layer, x, adj)
    assert out.shape == (B, N, Cout)
    assert jnp.allclose(out, ref, atol=ATOL, rtol=RTOL), "conv-residual path mismatch"

    # Case 2: Cin == Cout -> identity residual (+ 0.1 bias)
    x2 = jax.random.normal(k_x, (B, N, Cout), jnp.float32)
    layer2 = GraphConvolution(Cout, Cout, bias=True, residual=True, key=k_p2)
    out2 = jax.block_until_ready(layer2(x2, adj))
    ref2 = gcn_reference(layer2, x2, adj)
    assert jnp.allclose(out2, ref2, atol=ATOL, rtol=RTOL), "identity-residual path mismatch"

    # Case 3: residual=False (the only residual-off config PyTorch supports)
    layer3 = GraphConvolution(Cout, Cout, bias=True, residual=False, key=k_p3)
    out3 = jax.block_until_ready(layer3(x2, adj))
    ref3 = gcn_reference(layer3, x2, adj)
    assert jnp.allclose(out3, ref3, atol=ATOL, rtol=RTOL), "no-residual path mismatch"

    # Case 4: tile-aligned N -> adj streamed straight from the caller's f32 array
    # (no wrapper re-materialization), multiple row + contraction tiles, no out slice.
    B4, N4, Cin4, Cout4 = 1, 256, 8, 128
    x4 = jax.random.normal(k_x4, (B4, N4, Cin4), jnp.float32)
    adj4 = jax.random.uniform(k_a4, (B4, N4, N4), jnp.float32)
    adj4 = adj4 / jnp.sum(adj4, axis=-1, keepdims=True)
    layer4 = GraphConvolution(Cin4, Cout4, bias=True, residual=True, key=k_p4)
    out4 = jax.block_until_ready(layer4(x4, adj4, max_tile=128))
    ref4 = gcn_reference(layer4, x4, adj4)
    assert out4.shape == (B4, N4, Cout4)
    assert jnp.allclose(out4, ref4, atol=ATOL, rtol=RTOL), "tiled/direct-adj path mismatch"

    print("KERNEL_OK")
</pallas_src>

<mosaic_0001>
module attributes {stable_mosaic.version = 11 : i64} {
  func.func @_linear_kernel(%arg0: i32, %arg1: i32, %arg2: memref<1x128x8xf32, #tpu.memory_space<vmem>>, %arg3: memref<8x128xbf16, #tpu.memory_space<vmem>>, %arg4: memref<1x128x128xbf16, #tpu.memory_space<vmem>>) attributes {dimension_semantics = [#tpu.dimension_semantics<parallel>, #tpu.dimension_semantics<parallel>], iteration_bounds = array<i64: 2, 1>, scalar_prefetch = 0 : i64, scratch_operands = 0 : i64, tpu.core_type = #tpu.core_type<tc>, window_params = [{transform_indices = @transform_0, window_bounds = array<i64: 1, 128, 8>}, {pipeline_mode = #tpu.pipeline_mode<synchronous>, transform_indices = @transform_1, window_bounds = array<i64: 8, 128>}, {transform_indices = @transform_2, window_bounds = array<i64: 1, 128, 128>}]} {
    %c0 = arith.constant 0 : index
    %c0_0 = arith.constant 0 : index
    %c0_1 = arith.constant 0 : index
    %0 = vector.load %arg2[%c0, %c0_0, %c0_1] : memref<1x128x8xf32, #tpu.memory_space<vmem>>, vector<1x128x8xf32>
    %1 = vector.shape_cast %0 : vector<1x128x8xf32> to vector<128x8xf32>
    %2 = arith.truncf %1 : vector<128x8xf32> to vector<128x8xbf16>
    %c0_2 = arith.constant 0 : index
    %c0_3 = arith.constant 0 : index
    %3 = vector.load %arg3[%c0_2, %c0_3] : memref<8x128xbf16, #tpu.memory_space<vmem>>, vector<8x128xbf16>
    %cst = arith.constant dense<0.000000e+00> : vector<128x128xf32>
    %4 = tpu.matmul %2, %3, %cst {dimension_numbers = #tpu.dot_dimension_numbers<[1], [0], [0], [1], [0, 0, 1, 1], [], []>} : vector<128x8xbf16>, vector<8x128xbf16>, vector<128x128xf32> -> vector<128x128xf32>
    %5 = arith.truncf %4 : vector<128x128xf32> to vector<128x128xbf16>
    %c0_4 = arith.constant 0 : index
    %c0_5 = arith.constant 0 : index
    %c0_6 = arith.constant 0 : index
    %6 = vector.load %arg4[%c0_4, %c0_5, %c0_6] : memref<1x128x128xbf16, #tpu.memory_space<vmem>>, vector<1x128x128xbf16>
    %7 = vector.shape_cast %6 : vector<1x128x128xbf16> to vector<128x128xbf16>
    %8 = vector.shape_cast %5 : vector<128x128xbf16> to vector<1x128x128xbf16>
    tpu.vector_store %arg4[%c0_4, %c0_5, %c0_6], %8 {strides = array<i32>} : memref<1x128x128xbf16, #tpu.memory_space<vmem>>, vector<1x128x128xbf16>,
    return
  }
  func.func @transform_0(%arg0: i32, %arg1: i32) -> (i32, i32, i32) {
    %c0_i32 = arith.constant 0 : i32
    %c0_i32_0 = arith.constant 0 : i32
    return %arg0, %arg1, %c0_i32 : i32, i32, i32
  }
  func.func @transform_1(%arg0: i32, %arg1: i32) -> (i32, i32) {
    %c0_i32 = arith.constant 0 : i32
    %c0_i32_0 = arith.constant 0 : i32
    %c0_i32_1 = arith.constant 0 : i32
    return %c0_i32, %c0_i32_0 : i32, i32
  }
  func.func @transform_2(%arg0: i32, %arg1: i32) -> (i32, i32, i32) {
    %c0_i32 = arith.constant 0 : i32
    %c0_i32_0 = arith.constant 0 : i32
    return %arg0, %arg1, %c0_i32 : i32, i32, i32
  }
}

</mosaic_0001>

<llo_original>
// kernel: tpu_custom_call.1
$region0: #{tpu_custom_call.1}
  #allocation0 [shape = 'u32[]', space=smem, size = 0x4, offset = 0x4, fixed_abs, tag = 'smem constant byte address 0x4 - core index']
  #allocation1 [shape = 'u32[72,128]{1,0:T(1,128)}', space=vmem, size = 0x9000, scoped, tag = 'internal scratch']
  %s0 = inlined_call_operand.vmem [shape: f32[2,128,8], index: 0, kind: input, shape index: {}]
  %s1 = inlined_call_operand.vmem [shape: bf16[8,128], index: 1, kind: input, shape index: {}]
  %s2 = inlined_call_operand.hbm [shape: bf16[2,128,128], index: 2, kind: output, shape index: {}]
  %s3 = sld [smem:[#allocation0]]
  $region41: #{tpu_custom_call.1} parent=0
    _
  %s5 = ssub.s32 1, %s3
  %s6 = scalar_select 0, %s5, %s3
  $region1: #{tpu_custom_call.1} parent=0
    #allocation2 [shape = 'u8[65536]{0}', space=vmem, size = 0x10000, scoped, tag = 'output window, operand 0']
    #allocation3 [shape = 's32[2]{0}', space=sflag, size = 0x8, scoped, tag = 'scoped memory for tpu_custom_call.1']
    %7 = vsyncpa [#allocation3], 0
    %s8 = scalar_lea.sflag [#allocation3], 1
    %9 = vsyncpa %s8, 0
    loop: start=0, step=1, limit=4
    $region2: #{tpu_custom_call.1} parent=1 // loop_pre_header
      _
    $region3: #{tpu_custom_call.1} parent=1 // loop_header
      %s11 = sphi 0, %s15
      %p12 = scmp.ge.s32.totalorder %s11, 4
      %s18 = sphi 0, %s30
      %s19 = sphi 0, %s26
      %s20 = sphi 0, %s18
      %s21 = sphi 0, %s19
      %s22 = sphi 0, %s20
      %s23 = sphi 0, %s21
      %s35 = sphi 0, %s37
      %s38 = sphi 0, %s35
      %s39 = sphi 0, %s38
      %s55 = sphi 0, %s39
      %s59 = sphi 0, %s59
      %s61 = sphi 0, %s59
      %s62 = sphi 0, %s61
      %s76 = sphi 0, %s62
      %s84 = sphi 0, %s86
      %s87 = sphi 0, %s84
      %s88 = sphi 0, %s87
      %s104 = sphi 0, %s88
    $region4: #{tpu_custom_call.1} parent=1 // loop_header_branch
      %14 = sbr.rel (%p12) target = $region8
    $region5: #{tpu_custom_call.1} parent=1 // loop_body
      %s16 = ssub.s32 %s11, 1
      %s17 = ssub.s32 %s11, 2
      %s24 = sadd.s32 1, %s19
      %p25 = scmp.ge.s32.totalorder %s24, 1
      %s26 = scalar_select %p25, 0, %s24
      %s27 = sadd.s32 1, %s18
      %s28 = scalar_select %p25, %s27, %s18
      %p29 = scmp.ge.s32.totalorder %s28, 2
      %s30 = scalar_select %p29, 0, %s28
      %s31 = ssub.s32 %s18, %s30
      %s32 = ssub.s32 %s19, %s26
      %s33 = sor.u32 %s31, %s32
      %p34 = scmp.eq.s32.totalorder %s33, 0
      %s36 = sadd.s32 %s35, 1
      %s37 = scalar_select %p34, %s35, %s36
      %p40 = pneg %p34
      %p41 = scmp.eq.s32.totalorder %s11, 1
      %p42 = por %p40, %p41
      %p43 = scmp.ne.s32.totalorder %s35, %s38
      %p44 = scmp.eq.s32.totalorder %s11, 0
      %p45 = por %p43, %p44
      %p46 = scmp.ne.s32.totalorder %s35, %s38
      %p47 = scmp.eq.s32.totalorder %s16, 1
      %p48 = por %p46, %p47
      %p49 = scmp.ne.s32.totalorder %s38, %s39
      %p50 = scmp.eq.s32.totalorder %s16, 0
      %p51 = por %p49, %p50
      %p52 = scmp.ne.s32.totalorder %s38, %s39
      %p53 = scmp.eq.s32.totalorder %s17, 1
      %p54 = por %p52, %p53
      %p56 = scmp.ne.s32.totalorder %s39, %s55
      %p57 = scmp.eq.s32.totalorder %s17, 0
      %p58 = por %p56, %p57
      %s60 = sadd.s32 %s59, 1
      %p63 = scmp.eq.s32.totalorder %s11, 1
      %p64 = scmp.ne.s32.totalorder %s59, %s61
      %p65 = scmp.eq.s32.totalorder %s11, 0
      %p66 = por %p64, %p65
      %p67 = scmp.ne.s32.totalorder %s59, %s61
      %p68 = scmp.eq.s32.totalorder %s16, 1
      %p69 = por %p67, %p68
      %p70 = scmp.ne.s32.totalorder %s61, %s62
      %p71 = scmp.eq.s32.totalorder %s16, 0
      %p72 = por %p70, %p71
      %p73 = scmp.ne.s32.totalorder %s61, %s62
      %p74 = scmp.eq.s32.totalorder %s17, 1
      %p75 = por %p73, %p74
      %p77 = scmp.ne.s32.totalorder %s62, %s76
      %p78 = scmp.eq.s32.totalorder %s17, 0
      %p79 = por %p77, %p78
      %s80 = ssub.s32 %s18, %s30
      %s81 = ssub.s32 %s19, %s26
      %s82 = sor.u32 %s80, %s81
      %p83 = scmp.eq.s32.totalorder %s82, 0
      %s85 = sadd.s32 %s84, 1
      %s86 = scalar_select %p83, %s84, %s85
      %p89 = pneg %p83
      %p90 = scmp.eq.s32.totalorder %s11, 1
      %p91 = por %p89, %p90
      %p92 = scmp.ne.s32.totalorder %s84, %s87
      %p93 = scmp.eq.s32.totalorder %s11, 0
      %p94 = por %p92, %p93
      %p95 = scmp.ne.s32.totalorder %s84, %s87
      %p96 = scmp.eq.s32.totalorder %s16, 1
      %p97 = por %p95, %p96
      %p98 = scmp.ne.s32.totalorder %s87, %s88
      %p99 = scmp.eq.s32.totalorder %s16, 0
      %p100 = por %p98, %p99
      %p101 = scmp.ne.s32.totalorder %s87, %s88
      %p102 = scmp.eq.s32.totalorder %s17, 1
      %p103 = por %p101, %p102
      %p105 = scmp.ne.s32.totalorder %s88, %s104
      %p106 = scmp.eq.s32.totalorder %s17, 0
      %p107 = por %p105, %p106
      %p108 = scmp.le.s32.totalorder 1, %s11
      %p109 = scmp.lt.s32.totalorder %s11, 3
      %p110 = pnand %p108, %p109
      %p111 = pneg %p110
      // Predicated region
      $region9: #{tpu_custom_call.1} parent=5 // pred_check
        _
      $region10: #{tpu_custom_call.1} parent=5 // pred_check_branch
        %113 = sbr.rel (%p110) target = $region12
      $region11: #{tpu_custom_call.1} parent=5 // pred_region
        %s114 = ssub.s32 %s11, 1
        // Predicated region
        $region13: #{tpu_custom_call.1} parent=11 // pred_check
          %p115 = pneg %p72
        $region14: #{tpu_custom_call.1} parent=11 // pred_check_branch
          %117 = sbr.rel (%p115) target = $region16
        $region15: #{tpu_custom_call.1} parent=11 // pred_region
          _
        $region16: #{tpu_custom_call.1} parent=11 // pred_fallthru
          _
      $region12: #{tpu_custom_call.1} parent=5 // pred_fallthru
        _
      %p118 = scmp.lt.s32.totalorder %s11, 2
      // Predicated region
      $region17: #{tpu_custom_call.1} parent=5 // pred_check
        %p119 = pneg %p118
      $region18: #{tpu_custom_call.1} parent=5 // pred_check_branch
        %121 = sbr.rel (%p119) target = $region20
      $region19: #{tpu_custom_call.1} parent=5 // pred_region
        // Predicated region
        $region21: #{tpu_custom_call.1} parent=19 // pred_check
          %p122 = pneg %p45
        $region22: #{tpu_custom_call.1} parent=19 // pred_check_branch
          %124 = sbr.rel (%p122) target = $region24
        $region23: #{tpu_custom_call.1} parent=19 // pred_region
          %s125 = smul.u32 16, %s19
          %p126 = scmp.lt.s32.totalorder %s18, 1
          %s127 = scalar_select %p126, %s18, 1
          %p128 = scmp.lt.s32.totalorder %s125, 15
          %s129 = scalar_select %p128, %s125, 15
          %s130 = smul.addr %s127, 16
          %s131 = sadd.s32 %s129, %s130
          %s132 = smul.addr %s131, 8
          %s133 = scalar_lea.vmem %s0, %s132
          %s134 = smul.u32 16, %s19
        $region24: #{tpu_custom_call.1} parent=19 // pred_fallthru
          _
      $region20: #{tpu_custom_call.1} parent=5 // pred_fallthru
        _
      %p135 = scmp.le.s32.totalorder 1, %s11
      %p136 = scmp.lt.s32.totalorder %s11, 3
      %p137 = pnand %p135, %p136
      %p138 = pneg %p137
      // Predicated region
      $region25: #{tpu_custom_call.1} parent=5 // pred_check
        _
      $region26: #{tpu_custom_call.1} parent=5 // pred_check_branch
        %140 = sbr.rel (%p137) target = $region28
      $region27: #{tpu_custom_call.1} parent=5 // pred_region
        %s141 = ssub.s32 %s11, 1
        %s142 = smul.u32 16, %s21
        %p143 = scmp.lt.s32.totalorder %s20, 1
        %s144 = scalar_select %p143, %s20, 1
        %p145 = scmp.lt.s32.totalorder %s142, 15
        %s146 = scalar_select %p145, %s142, 15
        %s147 = smul.addr %s144, 16
        %s148 = sadd.s32 %s146, %s147
        %s149 = smul.addr %s148, 8
        %s150 = scalar_lea.vmem %s0, %s149
        %p151 = pneg %p51
        %p152 = pneg %p48
        %p153 = pneg %p72
        %p154 = pneg %p69
        %p155 = pneg %p100
        %p156 = pneg %p97
        %s157 = sand.u32 %s87, 1
        %s158 = scalar_lea.sflag [#allocation3], %s157
        %s159 = sand.u32 %s87, 1
        %s160 = smul.addr %s159, 64
        %s161 = scalar_lea.vmem [#allocation2], %s160
        %s162 = smul.u32 16, %s21
        %p163 = scmp.lt.s32.totalorder %s20, 1
        %s164 = scalar_select %p163, %s20, 1
        %p165 = scmp.lt.s32.totalorder %s162, 15
        %s166 = scalar_select %p165, %s162, 15
        %s167 = smul.addr %s164, 16
        %s168 = sadd.s32 %s166, %s167
        %s169 = smul.addr %s168, 8
        %s170 = scalar_lea.vmem %s0, %s169
        %s171 = smul.u32 16, %s21
        %s172 = smul.u32 16, %s21
        %v174 = vld [vmem:[%s170] sm:$0xff]
        %v175 = vld [vmem:[%s170 + $0x8] sm:$0xff]
        %v176 = vld [vmem:[%s170 + $0x10] sm:$0xff]
        %v177 = vld [vmem:[%s170 + $0x18] sm:$0xff]
        %v178 = vld [vmem:[%s170 + $0x20] sm:$0xff]
        %v179 = vld [vmem:[%s170 + $0x28] sm:$0xff]
        %v180 = vld [vmem:[%s170 + $0x30] sm:$0xff]
        %v181 = vld [vmem:[%s170 + $0x38] sm:$0xff]
        %v182 = vld [vmem:[%s170 + $0x40] sm:$0xff]
        %v183 = vld [vmem:[%s170 + $0x48] sm:$0xff]
        %v184 = vld [vmem:[%s170 + $0x50] sm:$0xff]
        %v185 = vld [vmem:[%s170 + $0x58] sm:$0xff]
        %v186 = vld [vmem:[%s170 + $0x60] sm:$0xff]
        %v187 = vld [vmem:[%s170 + $0x68] sm:$0xff]
        %v188 = vld [vmem:[%s170 + $0x70] sm:$0xff]
        %v189 = vld [vmem:[%s170 + $0x78] sm:$0xff]
        %v190 = vpack.c.bf16 %v175, %v174
        %v191 = vpack.c.bf16 %v177, %v176
        %v192 = vpack.c.bf16 %v179, %v178
        %v193 = vpack.c.bf16 %v181, %v180
        %v194 = vpack.c.bf16 %v183, %v182
        %v195 = vpack.c.bf16 %v185, %v184
        %v196 = vpack.c.bf16 %v187, %v186
        %v197 = vpack.c.bf16 %v189, %v188
        %v198 = vld [vmem:[%s1] sm:$0xf]
        %vm199 = vcmask 64512
        %v201 = vsel %vm199, %v190, 0
        %v204 = vsel %vm199, %v191, 0
        %v207 = vsel %vm199, %v192, 0
        %v210 = vsel %vm199, %v193, 0
        %v213 = vsel %vm199, %v194, 0
        %v216 = vsel %vm199, %v195, 0
        %v219 = vsel %vm199, %v196, 0
        %v222 = vsel %vm199, %v197, 0
        %vm224 = vcmask 1043456
        %v226 = vsel %vm224, %v198, 0
        %228 = vmatpush.bf16.msra.mxu0 0
        %229 = vmatpush.bf16.msra.mxu0 0
        %230 = vmatpush.bf16.msra.mxu0 0
        %231 = vmatpush.bf16.msra.mxu0 0
        %232 = vmatpush.bf16.msra.mxu0 0
        %233 = vmatpush.bf16.msra.mxu0 0
        %234 = vmatpush.bf16.msra.mxu0 0
        %235 = vmatpush.bf16.msra.mxu0 %v226
        %236 = vmatmul.bf16.gmra.mxu0 %v201
        %v237 = vpop.f32.mrf.mxu0
        %v238 = vadd.f32 0.0, %v237
        %v239 = vpop.f32.mrf.mxu0
        %v240 = vadd.f32 0.0, %v239
        %241 = vmatmul.bf16.gmra.mxu0 %v204
        %v242 = vpop.f32.mrf.mxu0
        %v243 = vadd.f32 0.0, %v242
        %v244 = vpop.f32.mrf.mxu0
        %v245 = vadd.f32 0.0, %v244
        %246 = vmatmul.bf16.gmra.mxu0 %v207
        %v247 = vpop.f32.mrf.mxu0
        %v248 = vadd.f32 0.0, %v247
        %v249 = vpop.f32.mrf.mxu0
        %v250 = vadd.f32 0.0, %v249
        %251 = vmatmul.bf16.gmra.mxu0 %v210
        %v252 = vpop.f32.mrf.mxu0
        %v253 = vadd.f32 0.0, %v252
        %v254 = vpop.f32.mrf.mxu0
        %v255 = vadd.f32 0.0, %v254
        %256 = vmatmul.bf16.gmra.mxu0 %v213
        %v257 = vpop.f32.mrf.mxu0
        %v258 = vadd.f32 0.0, %v257
        %v259 = vpop.f32.mrf.mxu0
        %v260 = vadd.f32 0.0, %v259
        %261 = vmatmul.bf16.gmra.mxu0 %v216
        %v262 = vpop.f32.mrf.mxu0
        %v263 = vadd.f32 0.0, %v262
        %v264 = vpop.f32.mrf.mxu0
        %v265 = vadd.f32 0.0, %v264
        %266 = vmatmul.bf16.gmra.mxu0 %v219
        %v267 = vpop.f32.mrf.mxu0
        %v268 = vadd.f32 0.0, %v267
        %v269 = vpop.f32.mrf.mxu0
        %v270 = vadd.f32 0.0, %v269
        %271 = vmatmul.bf16.gmra.mxu0 %v222
        %v272 = vpop.f32.mrf.mxu0
        %v273 = vadd.f32 0.0, %v272
        %v274 = vpop.f32.mrf.mxu0
        %v275 = vadd.f32 0.0, %v274
        %276 = vdwg.mxu0
        %v277 = vpack.c.bf16 %v238, %v238
        %v278 = vpack.c.bf16 %v240, %v240
        %v279 = vpack.c.bf16 %v243, %v243
        %v280 = vpack.c.bf16 %v245, %v245
        %v281 = vpack.c.bf16 %v248, %v248
        %v282 = vpack.c.bf16 %v250, %v250
        %v283 = vpack.c.bf16 %v253, %v253
        %v284 = vpack.c.bf16 %v255, %v255
        %v285 = vpack.c.bf16 %v258, %v258
        %v286 = vpack.c.bf16 %v260, %v260
        %v287 = vpack.c.bf16 %v263, %v263
        %v288 = vpack.c.bf16 %v265, %v265
        %v289 = vpack.c.bf16 %v268, %v268
        %v290 = vpack.c.bf16 %v270, %v270
        %v291 = vpack.c.bf16 %v273, %v273
        %v292 = vpack.c.bf16 %v275, %v275
        %293 = vst [vmem:[%s161] sm:$0xf] %v277
        %294 = vst [vmem:[%s161 + $0x4] sm:$0xf] %v278
        %295 = vst [vmem:[%s161 + $0x8] sm:$0xf] %v279
        %296 = vst [vmem:[%s161 + $0xc] sm:$0xf] %v280
        %297 = vst [vmem:[%s161 + $0x10] sm:$0xf] %v281
        %298 = vst [vmem:[%s161 + $0x14] sm:$0xf] %v282
        %299 = vst [vmem:[%s161 + $0x18] sm:$0xf] %v283
        %300 = vst [vmem:[%s161 + $0x1c] sm:$0xf] %v284
        %301 = vst [vmem:[%s161 + $0x20] sm:$0xf] %v285
        %302 = vst [vmem:[%s161 + $0x24] sm:$0xf] %v286
        %303 = vst [vmem:[%s161 + $0x28] sm:$0xf] %v287
        %304 = vst [vmem:[%s161 + $0x2c] sm:$0xf] %v288
        %305 = vst [vmem:[%s161 + $0x30] sm:$0xf] %v289
        %306 = vst [vmem:[%s161 + $0x34] sm:$0xf] %v290
        %307 = vst [vmem:[%s161 + $0x38] sm:$0xf] %v291
        %308 = vst [vmem:[%s161 + $0x3c] sm:$0xf] %v292
        %s309 = sand.u32 %s87, 1
        %s310 = scalar_lea.sflag [#allocation3], %s309
        %s311 = sand.u32 %s87, 1
        %s312 = smul.addr %s311, 64
        %s313 = scalar_lea.vmem [#allocation2], %s312
        // Predicated region
        $region29: #{tpu_custom_call.1} parent=27 // pred_check
          %p314 = pneg %p97
        $region30: #{tpu_custom_call.1} parent=27 // pred_check_branch
          %316 = sbr.rel (%p314) target = $region32
        $region31: #{tpu_custom_call.1} parent=27 // pred_region
          %s317 = smul.u32 16, %s21
          %319 = vsyncadd %s310, 0
          %s320 = smul.addr %s20, 16
          %s321 = sadd.s32 %s317, %s320
          %s322 = smul.addr %s321, 4
          %s323 = scalar_lea.hbm %s2, %s322
          %s324 = sshll.u32 %s313, 4
          %s325 = int_to_ptr.vmem [resolvable:$true] %s324
          %s326 = sshll.u32 %s323, 4
          %s327 = int_to_ptr.hbm [resolvable:$true] %s326
          %332 = dma.vmem_to_hbm [thread:$0]  %s325, 1024, %s327, %s310, 64, 64, 4
        $region32: #{tpu_custom_call.1} parent=27 // pred_fallthru
          _
      $region28: #{tpu_custom_call.1} parent=5 // pred_fallthru
        _
      %p333 = scmp.le.s32.totalorder 2, %s11
      // Predicated region
      $region33: #{tpu_custom_call.1} parent=5 // pred_check
        %p334 = pneg %p333
      $region34: #{tpu_custom_call.1} parent=5 // pred_check_branch
        %336 = sbr.rel (%p334) target = $region36
      $region35: #{tpu_custom_call.1} parent=5 // pred_region
        %s337 = ssub.s32 %s11, 2
        // Predicated region
        $region37: #{tpu_custom_call.1} parent=35 // pred_check
          %p338 = pneg %p103
        $region38: #{tpu_custom_call.1} parent=35 // pred_check_branch
          %340 = sbr.rel (%p338) target = $region40
        $region39: #{tpu_custom_call.1} parent=35 // pred_region
          %s341 = sand.u32 %s88, 1
          %s342 = scalar_lea.sflag [#allocation3], %s341
          %s343 = sand.u32 %s88, 1
          %s344 = smul.addr %s343, 64
          %s345 = scalar_lea.vmem [#allocation2], %s344
          %347 = dma.done %s342, 1024
        $region40: #{tpu_custom_call.1} parent=35 // pred_fallthru
          _
      $region36: #{tpu_custom_call.1} parent=5 // pred_fallthru
        _
    $region6: #{tpu_custom_call.1} parent=1 // loop_footer
      %s15 = sadd.s32 1, %s11
    $region7: #{tpu_custom_call.1} parent=1 // loop_footer_branch
      %10 = sbr.rel target = $region3
    $region8: #{tpu_custom_call.1} parent=1 // loop_exit
      _
    %348 = vsyncpa [#allocation3], 1
    %s349 = scalar_lea.sflag [#allocation3], 1
    %350 = vsyncpa %s349, 1

</llo_original>
